<compile_context>
chip_gen: v7x
topology: tpu7x:2x2x1
jax: 0.10.0
libtpu: 0.0.40
codegen_flags: <defaults>
</compile_context>

<pallas_src>
import jax
import jax.numpy as jnp
from jax.experimental import pallas as pl
from jax.experimental.pallas import tpu as pltpu


def _hbm_copy_kernel(x_hbm, o_hbm, sem):
    # Whole-array HBM -> HBM DMA.  No VMEM bounce, no vld/vst slot usage;
    # the DMA engines run this at copy roofline on v5e / v6e / v7x.
    cp = pltpu.make_async_copy(x_hbm, o_hbm, sem)
    cp.start()
    cp.wait()


def _materialized_copy(inputs: jax.Array) -> jax.Array:
    """Fresh-buffer copy of `inputs` via a single HBM->HBM DMA."""
    if inputs.size == 0:
        # Nothing to DMA; hand back an (empty) array of the right shape/dtype.
        return jnp.asarray(inputs)

    nbytes = inputs.size * inputs.dtype.itemsize
    return pl.pallas_call(
        _hbm_copy_kernel,
        out_shape=jax.ShapeDtypeStruct(inputs.shape, inputs.dtype),
        in_specs=[pl.BlockSpec(memory_space=pl.ANY)],
        out_specs=pl.BlockSpec(memory_space=pl.ANY),
        scratch_shapes=[pltpu.SemaphoreType.DMA],
        cost_estimate=pl.CostEstimate(
            flops=0, transcendentals=0, bytes_accessed=2 * nbytes
        ),
    )(inputs)


def dummy_position_embed(
    inputs: jax.Array,
    positions: jax.Array,
    *,
    materialize_copy: bool = False,
) -> jax.Array:
    """Pallas equivalent of DummyPositionEmbed.forward: returns `inputs`.

    By default this is a true pass-through (no kernel, no HBM traffic),
    exactly like the PyTorch module.  Set `materialize_copy=True` only if a
    physically distinct output buffer is required; that path runs a single
    HBM->HBM DMA copy kernel.
    """
    del positions  # unused, matching the PyTorch forward

    if not materialize_copy:
        # Identity: the optimal implementation is to do nothing.
        return inputs

    return _materialized_copy(inputs)


if __name__ == "__main__":
    # Shapes implied by a position-embedding forward: (batch, seq, hidden).
    batch, seq, hidden = 2, 8, 32

    key = jax.random.PRNGKey(0)
    k_in, k_pos = jax.random.split(key)
    inputs = jax.random.normal(k_in, (batch, seq, hidden), dtype=jnp.float32)
    positions = jax.random.normal(k_pos, (batch, seq), dtype=jnp.float32)

    # Default (recommended) path: pure identity, zero work.
    out = dummy_position_embed(inputs, positions)
    out = jax.block_until_ready(out)
    assert out.shape == inputs.shape
    assert out.dtype == inputs.dtype
    assert bool(jnp.array_equal(out, inputs))

    # Materialized-copy path: exercises the Pallas HBM->HBM DMA kernel.
    out_copy = dummy_position_embed(inputs, positions, materialize_copy=True)
    out_copy = jax.block_until_ready(out_copy)
    assert out_copy.shape == inputs.shape
    assert out_copy.dtype == inputs.dtype
    assert bool(jnp.array_equal(out_copy, inputs))

    print("KERNEL_OK")
</pallas_src>

<mosaic_0001>
module attributes {stable_mosaic.version = 11 : i64} {
  func.func @_hbm_copy_kernel(%arg0: memref<2x8x32xf32, #tpu.memory_space<any>>, %arg1: memref<2x8x32xf32, #tpu.memory_space<any>>, %arg2: memref<!tpu.dma_semaphore, #tpu.memory_space<semaphore_mem>>) attributes {dimension_semantics = [], scalar_prefetch = 0 : i64, scratch_operands = 1 : i64, tpu.core_type = #tpu.core_type<tc>} {
    tpu.enqueue_dma source(%arg0 : memref<2x8x32xf32, #tpu.memory_space<any>>) target(%arg1 : memref<2x8x32xf32, #tpu.memory_space<any>>) target_semaphore(%arg2 : memref<!tpu.dma_semaphore, #tpu.memory_space<semaphore_mem>>)
    tpu.wait_dma2 semaphore(%arg2 : memref<!tpu.dma_semaphore, #tpu.memory_space<semaphore_mem>>) src(%arg0 : memref<2x8x32xf32, #tpu.memory_space<any>>) dst(%arg1 : memref<2x8x32xf32, #tpu.memory_space<any>>)
    return
  }
}

</mosaic_0001>

<llo_original>
// kernel: tpu_custom_call.1
$region0: #{tpu_custom_call.1}
  #allocation0 [shape = 'u32[]', space=smem, size = 0x4, offset = 0x4, fixed_abs, tag = 'smem constant byte address 0x4 - core index']
  #allocation1 [shape = 'u32[144,128]{1,0:T(1,128)}', space=vmem, size = 0x12000, scoped, tag = 'internal scratch']
  #allocation2 [shape = 's32[1]{0}', space=sflag, size = 0x4, scoped, tag = 'scratch operand']
  #allocation3 [shape = 's32[]', space=sflag, size = 0x4, offset = 0, fixed_abs, tag = 'sflag constant byte address 0x0 - dummy sync flag']
  #allocation4 [shape = 'u32[0]{0}', space=smem, size = 0, offset = 0, fixed_abs, tag = 'smem constant byte address 0x0 - null']
  %s0 = inlined_call_operand.hbm [shape: f32[2,8,32], index: 0, kind: input, shape index: {}]
  %s1 = inlined_call_operand.hbm [shape: f32[2,8,32], index: 1, kind: output, shape index: {}]
  %s2 = sld [smem:[#allocation0]]
  $region2: #{tpu_custom_call.1} parent=0
    _
  %s4 = ssub.s32 1, %s2
  %s5 = scalar_select 0, %s4, %s2
  %s7 = sshll.u32 1, 14
  %s8 = sxor.u32 4294967295, %s7
  %s11 = sshll.u32 3, 24
  %s12 = sxor.u32 4294967295, %s11
  %s13 = sand.u32 0, %s12
  %s15 = sor.u32 %s13, 0
  %18 = dma.general %s0, 256, %s1, [#allocation2], [#allocation3], [#allocation4], %s15, 0
  %s19 = smul.u32 2, 8
  %s20 = smul.u32 %s19, 1
  %s21 = sshll.u32 %s20, 4
  %22 = dma.done [#allocation2], %s21
  %23 = vsyncmov [#allocation2]
  %s24 = vpop.sfrf %23
  %p25 = scmp.eq.s32.totalorder %s24, 0
  %p26 = pneg %p25
  %28 = shalt.err (%p26)

</llo_original>
